<compile_context>
chip_gen: v7x
topology: tpu7x:2x2x1
jax: 0.10.0
libtpu: 0.0.40
codegen_flags: <defaults>
</compile_context>

<pallas_src>
from typing import Dict, Optional, Tuple

import jax
import jax.numpy as jnp
from jax.experimental import pallas as pl
from jax.experimental.pallas import tpu as pltpu

_LEAKY_SLOPE = 0.01      # PyTorch nn.LeakyReLU default
_MAX_ROW_BLOCK = 1024    # max rows per grid step


def _leaky_relu(x):
    # slope in (0,1) => LeakyReLU(x) == max(x, slope*x); 2 VALU ops.
    return jnp.maximum(x, _LEAKY_SLOPE * x)


def _icr_clip_decoder_kernel(x_ref, w1_ref, b1_ref, w2_ref, b2_ref, out_ref):
    # x_ref:  (tm, d_model) block of flattened game_state
    # w1_ref: (d_model, hidden)   b1_ref: (1, hidden)
    # w2_ref: (1, hidden)         b2_ref: (1,) scalar in SMEM
    # out_ref:(1, tm)             lane-dense output row
    x = x_ref[...].astype(jnp.float32)
    x = _leaky_relu(x)
    # TODO(synk): nn.Dropout(p) is train-mode stochastic; implemented as the
    # inference-mode identity (matches module.eval()).

    # Layer 1 on the MXU.  Cast activations to the weight dtype so bf16 weights
    # take the bf16 MXU path; accumulate in f32.
    h = jnp.dot(x.astype(w1_ref.dtype), w1_ref[...],
                preferred_element_type=jnp.float32)
    h = _leaky_relu(h + b1_ref[...].astype(jnp.float32))

    # Layer 2 (hidden -> 1): broadcast-multiply + lane reduce on VPU/XLU
    # instead of an N=1 matmul that would waste the MXU.
    w2 = w2_ref[...].astype(jnp.float32)                 # (1, hidden)
    logit = jnp.sum(h * w2, axis=-1, keepdims=True)      # (tm, 1), f32
    logit = logit + b2_ref[0]                            # scalar bias from SMEM

    # Lane-dense store: transpose the column into a (1, tm) row (cheap XLU work
    # hidden under MXU/VPU slack) so the store is a wide unmasked vst.
    out_ref[...] = logit.T.astype(out_ref.dtype)


def _pick_row_tile(M: int, d_model: int, hidden: int,
                   x_bytes: int, w_bytes: int,
                   out_bytes: int) -> Tuple[int, Optional[int]]:
    """Pick a row tile (multiple of 128, or == M) and an optional vmem limit."""
    if M <= 128:
        tm = M                                   # single full block (legal: == full dim)
    else:
        # Aim for >= 2 grid steps so dimension_semantics=("parallel",) can shard
        # rows across both TensorCores on v7x; keep tm a multiple of 128 so the
        # (1, tm) output block is lane-aligned.
        half = (((M + 1) // 2) // 128) * 128
        tm = max(128, min(_MAX_ROW_BLOCK, half))

    def vmem_est(t: int) -> int:
        return (2 * t * d_model * x_bytes            # double-buffered activation blocks
                + 2 * 8 * t * out_bytes              # (1, t) output blocks (sublane-padded)
                + 2 * d_model * hidden * w_bytes     # W1 (conservatively x2)
                + 4 * 8 * hidden * w_bytes           # b1 + w2 rows (padded)
                + (1 << 12))                         # slack

    budget = 24 * 1024 * 1024                        # safe on v5e/v6e/v7x
    while tm > 128 and vmem_est(tm) > budget:
        tm = max(128, ((tm // 2) // 128) * 128)

    est = vmem_est(tm)
    # Only request extra scoped VMEM when the conservative 16 MiB v5e default
    # would be tight; never exceed v7x's 64 MiB physical VMEM.
    vmem_limit = None if est <= 12 * 1024 * 1024 else min(2 * est, 48 * 1024 * 1024)
    return tm, vmem_limit


def icr_clip_decoder_forward(game_state: jax.Array,
                             w1: jax.Array, b1: jax.Array,
                             w2: jax.Array, b2: jax.Array) -> Dict[str, jax.Array]:
    """game_state: (B, S, d_model) -> {'pred-icr_clip_label': (B, S)}."""
    B, S, d_model = game_state.shape
    hidden = w1.shape[1]
    M = B * S

    # Contiguous reshape (free in XLA) — no pad / slice round-trips.
    x2d = game_state.reshape(M, d_model)
    b1_row = b1.reshape(1, hidden)
    w2_row = w2.reshape(1, hidden)
    b2_s = b2.reshape(1).astype(jnp.float32)

    tm, vmem_limit = _pick_row_tile(
        M, d_model, hidden,
        jnp.dtype(game_state.dtype).itemsize,
        jnp.dtype(w1.dtype).itemsize,
        jnp.dtype(game_state.dtype).itemsize,
    )
    grid = (pl.cdiv(M, tm),)
    # NOTE: ragged last block computes on padded garbage rows, but their output
    # lanes are masked on writeback and nothing reduces across rows.

    params = dict(dimension_semantics=("parallel",))
    if vmem_limit is not None:
        params["vmem_limit_bytes"] = int(vmem_limit)

    out = pl.pallas_call(
        _icr_clip_decoder_kernel,
        out_shape=jax.ShapeDtypeStruct((1, M), game_state.dtype),
        grid=grid,
        in_specs=[
            pl.BlockSpec((tm, d_model), lambda i: (i, 0)),      # activations (row-tiled)
            pl.BlockSpec((d_model, hidden), lambda i: (0, 0)),  # W1 (resident)
            pl.BlockSpec((1, hidden), lambda i: (0, 0)),        # b1 (resident)
            pl.BlockSpec((1, hidden), lambda i: (0, 0)),        # W2 as a row (resident)
            pl.BlockSpec(memory_space=pltpu.MemorySpace.SMEM),  # b2 scalar in SMEM
        ],
        out_specs=pl.BlockSpec((1, tm), lambda i: (0, i)),      # lane-dense output row
        compiler_params=pltpu.CompilerParams(**params),
    )(x2d, w1, b1_row, w2_row, b2_s)

    # out.squeeze(2) in the PyTorch module: (B, S, 1) -> (B, S).
    return {"pred-icr_clip_label": out.reshape(B, S)}


class ICRClipDecoder:
    """JAX/Pallas port of the PyTorch iCRClipDecoder (inference forward)."""

    def __init__(self, d_model: int, hidden_dim: int, dropout: float,
                 key: jax.Array, param_dtype=jnp.float32):
        # param_dtype=jnp.bfloat16 enables the bf16 MXU path inside the kernel
        # (results then diverge from the f32 reference beyond ~1e-3).
        k1, k2, k3, k4 = jax.random.split(key, 4)
        bound1 = 1.0 / (d_model ** 0.5)
        bound2 = 1.0 / (hidden_dim ** 0.5)
        # Weights stored transposed relative to torch (in_features, out_features)
        # so the kernel does a plain row-major matmul.
        self.w1 = jax.random.uniform(k1, (d_model, hidden_dim), jnp.float32,
                                     -bound1, bound1).astype(param_dtype)
        self.b1 = jax.random.uniform(k2, (1, hidden_dim), jnp.float32,
                                     -bound1, bound1).astype(param_dtype)
        self.w2 = jax.random.uniform(k3, (1, hidden_dim), jnp.float32,
                                     -bound2, bound2).astype(param_dtype)
        self.b2 = jax.random.uniform(k4, (1, 1), jnp.float32,
                                     -bound2, bound2).astype(jnp.float32)
        self.dropout = dropout  # inference-mode: identity
        self.labels = ["icr_clip_label"]

    def __call__(self, game_state: jax.Array) -> Dict[str, jax.Array]:
        return icr_clip_decoder_forward(game_state, self.w1, self.b1, self.w2, self.b2)


def _reference(game_state, w1, b1, w2, b2):
    x = jnp.where(game_state >= 0, game_state, _LEAKY_SLOPE * game_state)
    h = x.astype(jnp.float32) @ w1.astype(jnp.float32) + b1.reshape(-1).astype(jnp.float32)
    h = jnp.where(h >= 0, h, _LEAKY_SLOPE * h)
    out = h @ w2.reshape(-1, 1).astype(jnp.float32) + b2.reshape(-1)
    return out[..., 0].astype(game_state.dtype)


if __name__ == "__main__":
    key = jax.random.PRNGKey(0)
    k_params, k_input = jax.random.split(key)

    B, S, d_model, hidden_dim = 2, 8, 32, 32
    module = ICRClipDecoder(d_model, hidden_dim, dropout=0.1, key=k_params)

    game_state = jax.random.normal(k_input, (B, S, d_model), dtype=jnp.float32)

    out = module(game_state)
    jax.block_until_ready(out)

    pred = out["pred-icr_clip_label"]
    ref = _reference(game_state, module.w1, module.b1, module.w2, module.b2)

    assert pred.shape == (B, S), pred.shape
    assert jnp.allclose(pred, ref, atol=1e-4, rtol=1e-4), (
        float(jnp.max(jnp.abs(pred.astype(jnp.float32) - ref.astype(jnp.float32))))
    )

    print("KERNEL_OK")
</pallas_src>

<mosaic_0001>
module attributes {stable_mosaic.version = 11 : i64} {
  func.func @_icr_clip_decoder_kernel(%arg0: i32, %arg1: memref<16x32xf32, #tpu.memory_space<vmem>>, %arg2: memref<32x32xf32, #tpu.memory_space<vmem>>, %arg3: memref<1x32xf32, #tpu.memory_space<vmem>>, %arg4: memref<1x32xf32, #tpu.memory_space<vmem>>, %arg5: memref<1xf32, #tpu.memory_space<smem>>, %arg6: memref<1x16xf32, #tpu.memory_space<vmem>>) attributes {dimension_semantics = [#tpu.dimension_semantics<parallel>], iteration_bounds = array<i64: 1>, scalar_prefetch = 0 : i64, scratch_operands = 0 : i64, tpu.core_type = #tpu.core_type<tc>, window_params = [{transform_indices = @transform_0, window_bounds = array<i64: 16, 32>}, {pipeline_mode = #tpu.pipeline_mode<synchronous>, transform_indices = @transform_1, window_bounds = array<i64: 32, 32>}, {pipeline_mode = #tpu.pipeline_mode<synchronous>, transform_indices = @transform_2, window_bounds = array<i64: 1, 32>}, {pipeline_mode = #tpu.pipeline_mode<synchronous>, transform_indices = @transform_3, window_bounds = array<i64: 1, 32>}, {transform_indices = @transform_4, window_bounds = array<i64: 1>}, {transform_indices = @transform_5, window_bounds = array<i64: 1, 16>}]} {
    %c0 = arith.constant 0 : index
    %c0_0 = arith.constant 0 : index
    %0 = vector.load %arg1[%c0, %c0_0] : memref<16x32xf32, #tpu.memory_space<vmem>>, vector<16x32xf32>
    %cst = arith.constant 0.00999999977 : f32
    %1 = vector.broadcast %cst : f32 to vector<16x32xf32>
    %2 = arith.mulf %1, %0 : vector<16x32xf32>
    %3 = arith.maximumf %0, %2 : vector<16x32xf32>
    %c0_1 = arith.constant 0 : index
    %c0_2 = arith.constant 0 : index
    %4 = vector.load %arg2[%c0_1, %c0_2] : memref<32x32xf32, #tpu.memory_space<vmem>>, vector<32x32xf32>
    %cst_3 = arith.constant dense<0.000000e+00> : vector<16x32xf32>
    %5 = tpu.matmul %3, %4, %cst_3 {dimension_numbers = #tpu.dot_dimension_numbers<[1], [0], [0], [1], [0, 0, 1, 1], [], []>} : vector<16x32xf32>, vector<32x32xf32>, vector<16x32xf32> -> vector<16x32xf32>
    %c0_4 = arith.constant 0 : index
    %c0_5 = arith.constant 0 : index
    %6 = vector.load %arg3[%c0_4, %c0_5] : memref<1x32xf32, #tpu.memory_space<vmem>>, vector<1x32xf32>
    %7 = vector.broadcast %6 : vector<1x32xf32> to vector<16x32xf32>
    %8 = arith.addf %5, %7 : vector<16x32xf32>
    %cst_6 = arith.constant 0.00999999977 : f32
    %9 = vector.broadcast %cst_6 : f32 to vector<16x32xf32>
    %10 = arith.mulf %9, %8 : vector<16x32xf32>
    %11 = arith.maximumf %8, %10 : vector<16x32xf32>
    %c0_7 = arith.constant 0 : index
    %c0_8 = arith.constant 0 : index
    %12 = vector.load %arg4[%c0_7, %c0_8] : memref<1x32xf32, #tpu.memory_space<vmem>>, vector<1x32xf32>
    %13 = vector.broadcast %12 : vector<1x32xf32> to vector<16x32xf32>
    %14 = arith.mulf %11, %13 : vector<16x32xf32>
    %cst_9 = arith.constant dense<0.000000e+00> : vector<16xf32>
    %15 = vector.multi_reduction <add>, %14, %cst_9 [1] : vector<16x32xf32> to vector<16xf32>
    %16 = vector.shape_cast %15 : vector<16xf32> to vector<16x1xf32>
    %c0_10 = arith.constant 0 : index
    %17 = memref.load %arg5[%c0_10] : memref<1xf32, #tpu.memory_space<smem>>
    %18 = vector.broadcast %17 : f32 to vector<16x1xf32>
    %19 = arith.addf %16, %18 : vector<16x1xf32>
    %20 = tpu.transpose %19, [1, 0] : vector<16x1xf32> -> vector<1x16xf32>
    %c0_11 = arith.constant 0 : index
    %c0_12 = arith.constant 0 : index
    %21 = vector.load %arg6[%c0_11, %c0_12] : memref<1x16xf32, #tpu.memory_space<vmem>>, vector<1x16xf32>
    tpu.vector_store %arg6[%c0_11, %c0_12], %20 {strides = array<i32>} : memref<1x16xf32, #tpu.memory_space<vmem>>, vector<1x16xf32>,
    return
  }
  func.func @transform_0(%arg0: i32) -> (i32, i32) {
    %c0_i32 = arith.constant 0 : i32
    %c0_i32_0 = arith.constant 0 : i32
    return %arg0, %c0_i32 : i32, i32
  }
  func.func @transform_1(%arg0: i32) -> (i32, i32) {
    %c0_i32 = arith.constant 0 : i32
    %c0_i32_0 = arith.constant 0 : i32
    %c0_i32_1 = arith.constant 0 : i32
    return %c0_i32, %c0_i32_0 : i32, i32
  }
  func.func @transform_2(%arg0: i32) -> (i32, i32) {
    %c0_i32 = arith.constant 0 : i32
    %c0_i32_0 = arith.constant 0 : i32
    %c0_i32_1 = arith.constant 0 : i32
    return %c0_i32, %c0_i32_0 : i32, i32
  }
  func.func @transform_3(%arg0: i32) -> (i32, i32) {
    %c0_i32 = arith.constant 0 : i32
    %c0_i32_0 = arith.constant 0 : i32
    %c0_i32_1 = arith.constant 0 : i32
    return %c0_i32, %c0_i32_0 : i32, i32
  }
  func.func @transform_4(%arg0: i32) -> i32 {
    %c0_i32 = arith.constant 0 : i32
    %c0_i32_0 = arith.constant 0 : i32
    return %c0_i32 : i32
  }
  func.func @transform_5(%arg0: i32) -> (i32, i32) {
    %c0_i32 = arith.constant 0 : i32
    %c0_i32_0 = arith.constant 0 : i32
    return %c0_i32, %arg0 : i32, i32
  }
}

</mosaic_0001>

<llo_original>
// kernel: tpu_custom_call.1
$region0: #{tpu_custom_call.1}
  #allocation0 [shape = 'u32[]', space=smem, size = 0x4, offset = 0x4, fixed_abs, tag = 'smem constant byte address 0x4 - core index']
  #allocation1 [shape = 'u32[144,128]{1,0:T(1,128)}', space=vmem, size = 0x12000, scoped, tag = 'internal scratch']
  #allocation2 [shape = 'f32[1]{0:T(128)S(6)}', space=smem, size = 0x200, scoped, tag = 'scoped memory for tpu_custom_call.1']
  %s0 = inlined_call_operand.hbm [shape: f32[16,32], index: 0, kind: input, shape index: {}]
  %s1 = inlined_call_operand.hbm [shape: f32[32,32], index: 1, kind: input, shape index: {}]
  %s2 = inlined_call_operand.vmem [shape: f32[1,32], index: 2, kind: input, shape index: {}]
  %s3 = inlined_call_operand.vmem [shape: f32[1,32], index: 3, kind: input, shape index: {}]
  %s4 = inlined_call_operand.<no memory space> [shape: f32[1], index: 4, kind: input, shape index: {}]
  %s5 = inlined_call_operand.hbm [shape: f32[1,16], index: 5, kind: output, shape index: {}]
  %s6 = sld [smem:[#allocation0]]
  $region38: #{tpu_custom_call.1} parent=0
    _
  %s8 = ssub.s32 1, %s6
  %s9 = scalar_select 0, %s8, %s6
  %10 = sst [smem:[#allocation2]] %s4
  $region1: #{tpu_custom_call.1} parent=0
    #allocation3 [shape = 'u8[8192]{0}', space=vmem, size = 0x2000, scoped, tag = 'input window, operand 0, single buffered']
    #allocation4 [shape = 's32[1]{0}', space=sflag, size = 0x4, scoped, tag = 'scoped memory for tpu_custom_call.1']
    #allocation5 [shape = 's32[1]{0}', space=sflag, size = 0x4, scoped, tag = 'scoped memory for tpu_custom_call.1']
    #allocation6 [shape = 'u8[16384]{0}', space=vmem, size = 0x4000, scoped, tag = 'input window, operand 1, single buffered']
    #allocation7 [shape = 's32[1]{0}', space=sflag, size = 0x4, scoped, tag = 'scoped memory for tpu_custom_call.1']
    #allocation8 [shape = 'u8[512]{0}', space=vmem, size = 0x400, scoped, tag = 'output window, operand 0, single buffered']
    %11 = vsyncpa [#allocation4], 0
    %12 = vsyncpa [#allocation7], 0
    %13 = vsyncpa [#allocation5], 0
    // Predicated region
    $region2: #{tpu_custom_call.1} parent=1 // pred_check
      _
    $region3: #{tpu_custom_call.1} parent=1 // pred_check_branch
      %15 = sbr.rel (0) target = $region5
    $region4: #{tpu_custom_call.1} parent=1 // pred_region
      %s17 = ssub.s32 256, 256
      %18 = vsyncadd [#allocation4], %s17
      %s19 = sshll.u32 [#allocation3], 4
      %s20 = int_to_ptr.vmem [resolvable:$true] %s19
      %25 = dma.hbm_to_vmem [thread:$0]  %s0, 256, %s20, [#allocation4], 128, 128, 8
    $region5: #{tpu_custom_call.1} parent=1 // pred_fallthru
      _
    // Predicated region
    $region6: #{tpu_custom_call.1} parent=1 // pred_check
      _
    $region7: #{tpu_custom_call.1} parent=1 // pred_check_branch
      %27 = sbr.rel (0) target = $region9
    $region8: #{tpu_custom_call.1} parent=1 // pred_region
      %s29 = ssub.s32 512, 512
      %30 = vsyncadd [#allocation7], %s29
      %s31 = sshll.u32 [#allocation6], 4
      %s32 = int_to_ptr.vmem [resolvable:$true] %s31
      %37 = dma.hbm_to_vmem [thread:$0]  %s1, 512, %s32, [#allocation7], 128, 128, 8
    $region9: #{tpu_custom_call.1} parent=1 // pred_fallthru
      _
    // Predicated region
    $region10: #{tpu_custom_call.1} parent=1 // pred_check
      _
    $region11: #{tpu_custom_call.1} parent=1 // pred_check_branch
      %39 = sbr.rel (0) target = $region13
    $region12: #{tpu_custom_call.1} parent=1 // pred_region
      _
    $region13: #{tpu_custom_call.1} parent=1 // pred_fallthru
      _
    // Predicated region
    $region14: #{tpu_custom_call.1} parent=1 // pred_check
      _
    $region15: #{tpu_custom_call.1} parent=1 // pred_check_branch
      %41 = sbr.rel (0) target = $region17
    $region16: #{tpu_custom_call.1} parent=1 // pred_region
      _
    $region17: #{tpu_custom_call.1} parent=1 // pred_fallthru
      _
    // Predicated region
    $region18: #{tpu_custom_call.1} parent=1 // pred_check
      _
    $region19: #{tpu_custom_call.1} parent=1 // pred_check_branch
      %43 = sbr.rel (0) target = $region21
    $region20: #{tpu_custom_call.1} parent=1 // pred_region
      _
    $region21: #{tpu_custom_call.1} parent=1 // pred_fallthru
      _
    // Predicated region
    $region22: #{tpu_custom_call.1} parent=1 // pred_check
      _
    $region23: #{tpu_custom_call.1} parent=1 // pred_check_branch
      %45 = sbr.rel (0) target = $region25
    $region24: #{tpu_custom_call.1} parent=1 // pred_region
      %46 = dma.done [#allocation4], 256
    $region25: #{tpu_custom_call.1} parent=1 // pred_fallthru
      _
    // Predicated region
    $region26: #{tpu_custom_call.1} parent=1 // pred_check
      _
    $region27: #{tpu_custom_call.1} parent=1 // pred_check_branch
      %48 = sbr.rel (0) target = $region29
    $region28: #{tpu_custom_call.1} parent=1 // pred_region
      %49 = dma.done [#allocation7], 512
    $region29: #{tpu_custom_call.1} parent=1 // pred_fallthru
      _
    %v50 = vld [vmem:[#allocation3] sm:$0xff]
    %v51 = vld [vmem:[#allocation3 + $0x8] sm:$0xff]
    %v52 = vmul.f32 %v50, 0.01
    %v53 = vmul.f32 %v51, 0.01
    %v54 = vmax.f32 %v50, %v52
    %v55 = vmax.f32 %v51, %v53
    %v56 = vld [vmem:[#allocation6] sm:$0xff]
    %v57 = vld [vmem:[#allocation6 + $0x8] sm:$0xff]
    %v58 = vld [vmem:[#allocation6 + $0x10] sm:$0xff]
    %v59 = vld [vmem:[#allocation6 + $0x18] sm:$0xff]
    %v60 = vld [vmem:[%s2] sm:$0x1]
    %v62 = vlaneseq
    %v63 = vshrl.u32 %v62, 7
    %v64 = vsub.s32 0, %v63
    %v65 = vrot.slane %v60, %v64
    %vm67 = vcmask 261120
    %v69 = vsel %vm67, %v54, 0
    %v72 = vsel %vm67, %v55, 0
    %74 = vmatprep.subr.mxu0 0.0
    %75 = vmatpush1.msra.mxu0 %v56
    %76 = vmatprep.subr.mxu0 0.0
    %77 = vmatpush1.msra.mxu0 %v57
    %78 = vmatprep.subr.mxu0 0.0
    %79 = vmatpush1.msra.mxu0 %v58
    %80 = vmatprep.subr.mxu0 0.0
    %81 = vmatpush1.msra.mxu0 %v59
    %82 = vmatprep.subr.mxu0 0.0
    %83 = vmatpush1.msra.mxu0 0.0
    %84 = vmatprep.subr.mxu0 0.0
    %85 = vmatpush1.msra.mxu0 0.0
    %86 = vmatprep.subr.mxu0 0.0
    %87 = vmatpush1.msra.mxu0 0.0
    %88 = vmatprep.subr.mxu0 0.0
    %89 = vmatpush1.msra.mxu0 0.0
    %90 = vmatprep.subr.mxu0 0.0
    %91 = vmatpush1.msra.mxu0 0.0
    %92 = vmatprep.subr.mxu0 0.0
    %93 = vmatpush1.msra.mxu0 0.0
    %94 = vmatprep.subr.mxu0 0.0
    %95 = vmatpush1.msra.mxu0 0.0
    %96 = vmatprep.subr.mxu0 0.0
    %97 = vmatpush1.msra.mxu0 0.0
    %98 = vmatprep.subr.mxu0 0.0
    %99 = vmatpush1.msra.mxu0 0.0
    %100 = vmatprep.subr.mxu0 0.0
    %101 = vmatpush1.msra.mxu0 0.0
    %102 = vmatprep.subr.mxu0 0.0
    %103 = vmatpush1.msra.mxu0 0.0
    %104 = vmatprep.subr.mxu0 0.0
    %105 = vmatpush1.msra.mxu0 0.0
    %106 = vmatprep.subr.mxu0 0.0
    %107 = vmatpush1.msra.mxu0 0.0
    %108 = vmatprep.subr.mxu0 0.0
    %109 = vmatpush1.msra.mxu0 0.0
    %110 = vmatprep.subr.mxu0 0.0
    %111 = vmatpush1.msra.mxu0 0.0
    %112 = vmatprep.subr.mxu0 0.0
    %113 = vmatpush1.msra.mxu0 0.0
    %114 = vmatprep.subr.mxu0 0.0
    %115 = vmatpush1.msra.mxu0 0.0
    %116 = vmatprep.subr.mxu0 0.0
    %117 = vmatpush1.msra.mxu0 0.0
    %118 = vmatprep.subr.mxu0 0.0
    %119 = vmatpush1.msra.mxu0 0.0
    %120 = vmatprep.subr.mxu0 0.0
    %121 = vmatpush1.msra.mxu0 0.0
    %122 = vmatprep.subr.mxu0 0.0
    %123 = vmatpush1.msra.mxu0 0.0
    %124 = vmatprep.subr.mxu0 0.0
    %125 = vmatpush1.msra.mxu0 0.0
    %126 = vmatprep.subr.mxu0 0.0
    %127 = vmatpush1.msra.mxu0 0.0
    %128 = vmatprep.subr.mxu0 0.0
    %129 = vmatpush1.msra.mxu0 0.0
    %130 = vmatprep.subr.mxu0 0.0
    %131 = vmatpush1.msra.mxu0 0.0
    %132 = vmatprep.subr.mxu0 0.0
    %133 = vmatpush1.msra.mxu0 0.0
    %134 = vmatprep.subr.mxu0 0.0
    %135 = vmatpush1.msra.mxu0 0.0
    %136 = vmatprep.subr.mxu0 0.0
    %137 = vmatpush1.msra.mxu0 0.0
    %138 = vmatprep.mubr.f32.mxu0 0.0
    %139 = vmatmul.mubr.f32.gmra.mrb[0].mxu0 %v69
    %v140 = vpop.f32.mrb[0].mxu0
    %v141 = vadd.f32 %v65, %v140
    %v142 = vpop.f32.mrb[0].mxu0
    %143 = vmatprep.mubr.f32.mxu0 0.0
    %144 = vmatmul.mubr.f32.gmra.mrb[0].mxu0 %v72
    %v145 = vpop.f32.mrb[0].mxu0
    %v146 = vadd.f32 %v65, %v145
    %v147 = vpop.f32.mrb[0].mxu0
    %148 = vdwg.mxu0
    %v149 = vmul.f32 %v141, 0.01
    %v150 = vmul.f32 %v146, 0.01
    %v151 = vmax.f32 %v141, %v149
    %v152 = vmax.f32 %v146, %v150
    %v153 = vld [vmem:[%s3] sm:$0x1]
    %v155 = vlaneseq
    %v156 = vshrl.u32 %v155, 7
    %v157 = vsub.s32 0, %v156
    %v158 = vrot.slane %v153, %v157
    %v160 = vmul.f32 %v151, %v158
    %v161 = vmul.f32 %v152, %v158
    %v162 = vsel %vm67, %v160, 0.0
    %163 = vadd.xlane.f32.xlu0 %v162
    %v164 = vpop.xlane.xlu0 %163
    %v165 = vsel %vm67, %v161, 0.0
    %166 = vadd.xlane.f32.xlu0 %v165
    %v167 = vpop.xlane.xlu0 %166
    %s168 = sld [smem:[#allocation2]]
    %v169 = vstv %s168
    %v170 = vadd.f32 %v164, %v169
    %v171 = vadd.f32 %v167, %v169
    %172 = vxpose.xlu0.b32.start [1/16] %v170, 128
    %173 = vxpose.xlu0.b32.cont [2/16] %v171, 128
    %174 = vxpose.xlu0.b32.cont [3/16] 0.0, 128
    %175 = vxpose.xlu0.b32.cont [4/16] 0.0, 128
    %176 = vxpose.xlu0.b32.cont [5/16] 0.0, 128
    %177 = vxpose.xlu0.b32.cont [6/16] 0.0, 128
    %178 = vxpose.xlu0.b32.cont [7/16] 0.0, 128
    %179 = vxpose.xlu0.b32.cont [8/16] 0.0, 128
    %180 = vxpose.xlu0.b32.cont [9/16] 0.0, 128
    %181 = vxpose.xlu0.b32.cont [10/16] 0.0, 128
    %182 = vxpose.xlu0.b32.cont [11/16] 0.0, 128
    %183 = vxpose.xlu0.b32.cont [12/16] 0.0, 128
    %184 = vxpose.xlu0.b32.cont [13/16] 0.0, 128
    %185 = vxpose.xlu0.b32.cont [14/16] 0.0, 128
    %186 = vxpose.xlu0.b32.cont [15/16] 0.0, 128
    %187 = vxpose.xlu0.b32.end [16/16] 0.0, 128
    %v188 = vpop.trf.xlu0
    %v189 = vpop.trf.xlu0
    %v190 = vpop.trf.xlu0
    %v191 = vpop.trf.xlu0
    %v192 = vpop.trf.xlu0
    %v193 = vpop.trf.xlu0
    %v194 = vpop.trf.xlu0
    %v195 = vpop.trf.xlu0
    %v196 = vpop.trf.xlu0
    %v197 = vpop.trf.xlu0
    %v198 = vpop.trf.xlu0
    %v199 = vpop.trf.xlu0
    %v200 = vpop.trf.xlu0
    %v201 = vpop.trf.xlu0
    %v202 = vpop.trf.xlu0
    %v203 = vpop.trf.xlu0
    %vm204 = vcmask 122880
    %205 = vst.msk [vmem:[#allocation8] sm:$0x1] %vm204, %v188
    // Predicated region
    $region30: #{tpu_custom_call.1} parent=1 // pred_check
      _
    $region31: #{tpu_custom_call.1} parent=1 // pred_check_branch
      %207 = sbr.rel (0) target = $region33
    $region32: #{tpu_custom_call.1} parent=1 // pred_region
      %s209 = ssub.s32 16, 16
      %210 = vsyncadd [#allocation5], %s209
      %s212 = sshll.u32 [#allocation8], 4
      %s213 = int_to_ptr.vmem [resolvable:$true] %s212
      %215 = dma.vmem_to_hbm [thread:$0]  %s213, 16, %s5, [#allocation5]
    $region33: #{tpu_custom_call.1} parent=1 // pred_fallthru
      _
    // Predicated region
    $region34: #{tpu_custom_call.1} parent=1 // pred_check
      _
    $region35: #{tpu_custom_call.1} parent=1 // pred_check_branch
      %217 = sbr.rel (0) target = $region37
    $region36: #{tpu_custom_call.1} parent=1 // pred_region
      %218 = dma.done [#allocation5], 16
    $region37: #{tpu_custom_call.1} parent=1 // pred_fallthru
      _
    %219 = vsyncpa [#allocation4], 1
    %220 = vsyncpa [#allocation7], 1
    %221 = vsyncpa [#allocation5], 1

</llo_original>
